<compile_context>
chip_gen: v7x
topology: tpu7x:2x2x1
jax: 0.10.0
libtpu: 0.0.40
codegen_flags: <defaults>
</compile_context>

<pallas_src>
import jax
import jax.numpy as jnp
from jax.experimental import pallas as pl
from jax.experimental.pallas import tpu as pltpu


def _round_up(x: int, m: int) -> int:
    return ((x + m - 1) // m) * m


# -----------------------------------------------------------------------------
# Phase A: per-core partial sums of the un-normalized view scores.
#   acc[c, 0, m] = sum_{n in core c's tiles} sum_h q[n, h] * tanh(z[n, m, :] @ Wp + b)[h]
# -----------------------------------------------------------------------------
def _score_kernel(z_ref, q_ref, wbig_ref, bbig_ref, seg_ref, acc_ref):
    # z_ref   : (tile_n, M*D)  native-layout z block
    # q_ref   : (tile_n, H)
    # wbig_ref: (M*D, M*H)     kron(I_M, Wp), already in z.dtype (MXU-native)
    # bbig_ref: (1, M*H)       bias tiled across views, f32
    # seg_ref : (M*H, M)       0/1 per-view segment-sum matrix, f32
    # acc_ref : (1, 1, M)      resident per-core accumulator, f32
    m_views = seg_ref.shape[1]

    @pl.when(pl.program_id(1) == 0)
    def _init():
        acc_ref[...] = jnp.zeros_like(acc_ref)

    # One wide MXU matmul for all M views (f32 accumulation) + one tanh pass (EUP).
    proj = jnp.tanh(
        jnp.dot(z_ref[...], wbig_ref[...], preferred_element_type=jnp.float32)
        + bbig_ref[...])                                          # (tile_n, M*H)
    qf = q_ref[...].astype(jnp.float32)                           # (tile_n, H)
    q_rep = jnp.concatenate([qf] * m_views, axis=1)               # (tile_n, M*H)
    col_sum = jnp.sum(proj * q_rep, axis=0, keepdims=True)        # (1, M*H), exact f32
    partial = jnp.dot(col_sum, seg_ref[...],
                      preferred_element_type=jnp.float32)         # (1, M)
    acc_ref[...] += jnp.reshape(partial, acc_ref.shape)


# -----------------------------------------------------------------------------
# Phase B: out[n, :] = sum_m beta[m] * z[n, m, :] on the native (tile_n, M*D)
#          layout: broadcast multiply + M exact static lane-slice adds.
# -----------------------------------------------------------------------------
def _apply_kernel(beta_rep_ref, z_ref, out_ref):
    # beta_rep_ref: (1, M*D)   beta repeated D times per view, f32
    # z_ref       : (tile_n, M*D)
    # out_ref     : (tile_n, D)
    d = out_ref.shape[-1]
    m_views = z_ref.shape[-1] // d
    weighted = z_ref[...].astype(jnp.float32) * beta_rep_ref[...]  # (tile_n, M*D)
    acc = weighted[:, 0:d]
    for m in range(1, m_views):                                    # M is small & static
        acc = acc + weighted[:, m * d:(m + 1) * d]
    out_ref[...] = acc.astype(out_ref.dtype)


def apatt_forward(z, q, Wp, b, *, tile_n=None):
    """z: (N, M, D), q: (N, H), Wp: (D, H) (= torch weight.T), b: (H,) or (1, H)."""
    N, M, D = z.shape
    H = Wp.shape[1]
    assert q.shape == (N, H)
    MD, MH = M * D, M * H
    itemsize = z.dtype.itemsize

    # ---- tile selection: big blocks, bounded so double-buffered inputs plus the
    #      f32 temporaries stay well under v7x's 32 MiB scoped VMEM default.
    if tile_n is None:
        row_cost = (2 * MD * itemsize        # z block (double-buffered)
                    + 2 * H * itemsize       # q block (double-buffered)
                    + 3 * MH * 4             # proj / q_rep / product temporaries
                    + MD * 4 + 2 * D * 4)    # phase-B temporary + out block
        budget = 20 * 1024 * 1024
        tile_n = max(128, min(4096, (budget // row_cost) // 128 * 128))
    else:
        tile_n = max(8, _round_up(int(tile_n), 8))
    tile_n = min(tile_n, _round_up(N, 128))

    # ---- native layout (free reshape, NO HBM transpose of z).  Non-aligned N is
    #      zero-padded: zero q rows contribute nothing to the score sum and zero
    #      z rows yield zero outputs that are sliced away.
    n_pad = _round_up(N, tile_n)
    z_flat = z.reshape(N, MD)
    q_in = q
    if n_pad != N:
        z_flat = jnp.pad(z_flat, ((0, n_pad - N), (0, 0)))
        q_in = jnp.pad(q, ((0, n_pad - N), (0, 0)))

    n_tiles = n_pad // tile_n
    n_cores = 2 if (n_tiles >= 2 and n_tiles % 2 == 0) else 1   # v7x megacore split
    tiles_per_core = n_tiles // n_cores

    # ---- constants built once, already in the dtypes the kernels consume.
    eye_m = jnp.eye(M, dtype=jnp.float32)
    w_big = jnp.kron(eye_m, Wp.astype(jnp.float32)).astype(z.dtype)       # (MD, MH)
    b_big = jnp.tile(jnp.reshape(b, (1, H)).astype(jnp.float32), (1, M))  # (1, MH)
    seg = jnp.kron(eye_m, jnp.ones((H, 1), jnp.float32))                  # (MH, M)

    # ---- Phase A: per-core partial score sums.
    partials = pl.pallas_call(
        _score_kernel,
        out_shape=jax.ShapeDtypeStruct((n_cores, 1, M), jnp.float32),
        grid_spec=pltpu.PrefetchScalarGridSpec(
            num_scalar_prefetch=0,
            grid=(n_cores, tiles_per_core),
            in_specs=[
                pl.BlockSpec((tile_n, MD), lambda c, i: (c * tiles_per_core + i, 0)),
                pl.BlockSpec((tile_n, H), lambda c, i: (c * tiles_per_core + i, 0)),
                pl.BlockSpec((MD, MH), lambda c, i: (0, 0)),
                pl.BlockSpec((1, MH), lambda c, i: (0, 0)),
                pl.BlockSpec((MH, M), lambda c, i: (0, 0)),
            ],
            out_specs=pl.BlockSpec((1, 1, M), lambda c, i: (c, 0, 0)),
        ),
        compiler_params=pltpu.CompilerParams(
            dimension_semantics=("parallel", "arbitrary")),
        cost_estimate=pl.CostEstimate(
            flops=2 * n_pad * MD * MH + 4 * n_pad * MH,
            transcendentals=n_pad * MH,
            bytes_accessed=n_pad * (MD + H) * itemsize),
    )(z_flat, q_in, w_big, b_big, seg)

    # ---- tiny epilogue in XLA: reduce per-core partials, mean over the TRUE N,
    #      softmax over views, and the lane-expanded beta row consumed by phase B.
    w_vec = jnp.sum(partials, axis=(0, 1)) / N                   # (M,)
    beta = jax.nn.softmax(w_vec)                                 # (M,)
    beta_rep = jnp.repeat(beta, D).reshape(1, MD).astype(jnp.float32)

    # ---- Phase B: weighted sum over views, streamed and core-parallel.
    out_padded = pl.pallas_call(
        _apply_kernel,
        out_shape=jax.ShapeDtypeStruct((n_pad, D), z.dtype),
        grid_spec=pltpu.PrefetchScalarGridSpec(
            num_scalar_prefetch=0,
            grid=(n_tiles,),
            in_specs=[
                pl.BlockSpec((1, MD), lambda i: (0, 0)),
                pl.BlockSpec((tile_n, MD), lambda i: (i, 0)),
            ],
            out_specs=pl.BlockSpec((tile_n, D), lambda i: (i, 0)),
        ),
        compiler_params=pltpu.CompilerParams(
            dimension_semantics=("parallel",)),
        cost_estimate=pl.CostEstimate(
            flops=2 * n_pad * MD,
            transcendentals=0,
            bytes_accessed=n_pad * MD * itemsize + n_pad * D * itemsize),
    )(beta_rep, z_flat)

    return out_padded[:N]


def apatt_reference(z, q, Wp, b):
    proj = jnp.tanh(jnp.einsum("nmd,dh->nmh", z, Wp) + jnp.reshape(b, (1, 1, -1)))
    w = jnp.mean(jnp.sum(q[:, None, :] * proj, axis=-1, keepdims=True), axis=0)  # (M, 1)
    beta = jax.nn.softmax(w, axis=0)                                              # (M, 1)
    return jnp.sum(beta[None, :, :] * z, axis=1)                                  # (N, D)


if __name__ == "__main__":
    # Small deterministic shapes: N nodes, M semantic views, in_size=16, hidden=32.
    N, M, in_size, hidden = 500, 8, 16, 32

    key = jax.random.PRNGKey(0)
    kz, kq, kw, kb = jax.random.split(key, 4)
    z = jax.random.normal(kz, (N, M, in_size), dtype=jnp.float32)
    q = jax.random.normal(kq, (N, hidden), dtype=jnp.float32)

    # nn.Linear(in_size, hidden): torch weight is (hidden, in_size); Wp = weight.T.
    bound = 1.0 / (in_size ** 0.5)
    Wp = jax.random.uniform(kw, (in_size, hidden), jnp.float32, -bound, bound)
    b = jax.random.uniform(kb, (hidden,), jnp.float32, -bound, bound)

    # tile_n=128 here only to exercise the multi-tile grid (4 tiles -> 2 per core),
    # the cross-tile accumulation, per-core partials and the zero-padding paths in
    # this smoke test.  Real callers should leave tile_n=None (auto, multi-MiB blocks).
    out = apatt_forward(z, q, Wp, b, tile_n=128)
    out = jax.block_until_ready(out)

    ref = apatt_reference(z, q, Wp, b)
    assert out.shape == (N, in_size), out.shape
    max_diff = float(jnp.max(jnp.abs(out - ref)))
    # Tolerance covers MXU default-precision f32 passes in the projection matmul.
    assert jnp.allclose(out, ref, atol=2e-3, rtol=2e-3), f"mismatch, max|diff|={max_diff}"

    print("KERNEL_OK")
</pallas_src>

<mosaic_0001>
module attributes {stable_mosaic.version = 11 : i64} {
  func.func @_score_kernel(%arg0: i32, %arg1: i32, %arg2: memref<128x128xf32, #tpu.memory_space<vmem>>, %arg3: memref<128x32xf32, #tpu.memory_space<vmem>>, %arg4: memref<128x256xf32, #tpu.memory_space<vmem>>, %arg5: memref<1x256xf32, #tpu.memory_space<vmem>>, %arg6: memref<256x8xf32, #tpu.memory_space<vmem>>, %arg7: memref<1x1x8xf32, #tpu.memory_space<vmem>>) attributes {dimension_semantics = [#tpu.dimension_semantics<parallel>, #tpu.dimension_semantics<arbitrary>], iteration_bounds = array<i64: 2, 2>, scalar_prefetch = 0 : i64, scratch_operands = 0 : i64, tpu.core_type = #tpu.core_type<tc>, window_params = [{transform_indices = @transform_0, window_bounds = array<i64: 128, 128>}, {transform_indices = @transform_1, window_bounds = array<i64: 128, 32>}, {pipeline_mode = #tpu.pipeline_mode<synchronous>, transform_indices = @transform_2, window_bounds = array<i64: 128, 256>}, {pipeline_mode = #tpu.pipeline_mode<synchronous>, transform_indices = @transform_3, window_bounds = array<i64: 1, 256>}, {pipeline_mode = #tpu.pipeline_mode<synchronous>, transform_indices = @transform_4, window_bounds = array<i64: 256, 8>}, {transform_indices = @transform_5, window_bounds = array<i64: 1, 1, 8>}]} {
    %c0_i32 = arith.constant 0 : i32
    %0 = arith.cmpi eq, %arg1, %c0_i32 : i32
    %1 = arith.extui %0 : i1 to i32
    %c0_i32_0 = arith.constant 0 : i32
    %2 = arith.cmpi ne, %1, %c0_i32_0 : i32
    scf.if %2 {
      %cst_18 = arith.constant 0.000000e+00 : f32
      %21 = vector.broadcast %cst_18 : f32 to vector<1x1x8xf32>
      %c0_19 = arith.constant 0 : index
      %c0_20 = arith.constant 0 : index
      %c0_21 = arith.constant 0 : index
      %22 = vector.load %arg7[%c0_19, %c0_20, %c0_21] : memref<1x1x8xf32, #tpu.memory_space<vmem>>, vector<1x1x8xf32>
      tpu.vector_store %arg7[%c0_19, %c0_20, %c0_21], %21 {strides = array<i32>} : memref<1x1x8xf32, #tpu.memory_space<vmem>>, vector<1x1x8xf32>,
    } else {
    }
    %c0 = arith.constant 0 : index
    %c0_1 = arith.constant 0 : index
    %3 = vector.load %arg2[%c0, %c0_1] : memref<128x128xf32, #tpu.memory_space<vmem>>, vector<128x128xf32>
    %c0_2 = arith.constant 0 : index
    %c0_3 = arith.constant 0 : index
    %4 = vector.load %arg4[%c0_2, %c0_3] : memref<128x256xf32, #tpu.memory_space<vmem>>, vector<128x256xf32>
    %cst = arith.constant dense<0.000000e+00> : vector<128x256xf32>
    %5 = tpu.matmul %3, %4, %cst {dimension_numbers = #tpu.dot_dimension_numbers<[1], [0], [0], [1], [0, 0, 1, 1], [], []>} : vector<128x128xf32>, vector<128x256xf32>, vector<128x256xf32> -> vector<128x256xf32>
    %c0_4 = arith.constant 0 : index
    %c0_5 = arith.constant 0 : index
    %6 = vector.load %arg5[%c0_4, %c0_5] : memref<1x256xf32, #tpu.memory_space<vmem>>, vector<1x256xf32>
    %7 = vector.broadcast %6 : vector<1x256xf32> to vector<128x256xf32>
    %8 = arith.addf %5, %7 : vector<128x256xf32>
    %9 = math.tanh %8 : vector<128x256xf32>
    %c0_6 = arith.constant 0 : index
    %c0_7 = arith.constant 0 : index
    %10 = vector.load %arg3[%c0_6, %c0_7] : memref<128x32xf32, #tpu.memory_space<vmem>>, vector<128x32xf32>
    %11 = tpu.concatenate %10, %10, %10, %10, %10, %10, %10, %10 in 1 : vector<128x32xf32>, vector<128x32xf32>, vector<128x32xf32>, vector<128x32xf32>, vector<128x32xf32>, vector<128x32xf32>, vector<128x32xf32>, vector<128x32xf32> -> vector<128x256xf32>
    %12 = arith.mulf %9, %11 : vector<128x256xf32>
    %cst_8 = arith.constant dense<0.000000e+00> : vector<256xf32>
    %13 = vector.multi_reduction <add>, %12, %cst_8 [0] : vector<128x256xf32> to vector<256xf32>
    %14 = vector.shape_cast %13 : vector<256xf32> to vector<1x256xf32>
    %c0_9 = arith.constant 0 : index
    %c0_10 = arith.constant 0 : index
    %15 = vector.load %arg6[%c0_9, %c0_10] : memref<256x8xf32, #tpu.memory_space<vmem>>, vector<256x8xf32>
    %cst_11 = arith.constant dense<0.000000e+00> : vector<1x8xf32>
    %16 = tpu.matmul %14, %15, %cst_11 {dimension_numbers = #tpu.dot_dimension_numbers<[1], [0], [0], [1], [0, 0, 1, 1], [], []>} : vector<1x256xf32>, vector<256x8xf32>, vector<1x8xf32> -> vector<1x8xf32>
    %c0_12 = arith.constant 0 : index
    %c0_13 = arith.constant 0 : index
    %c0_14 = arith.constant 0 : index
    %17 = vector.load %arg7[%c0_12, %c0_13, %c0_14] : memref<1x1x8xf32, #tpu.memory_space<vmem>>, vector<1x1x8xf32>
    %18 = vector.shape_cast %16 : vector<1x8xf32> to vector<1x1x8xf32>
    %19 = arith.addf %17, %18 : vector<1x1x8xf32>
    %c0_15 = arith.constant 0 : index
    %c0_16 = arith.constant 0 : index
    %c0_17 = arith.constant 0 : index
    %20 = vector.load %arg7[%c0_15, %c0_16, %c0_17] : memref<1x1x8xf32, #tpu.memory_space<vmem>>, vector<1x1x8xf32>
    tpu.vector_store %arg7[%c0_15, %c0_16, %c0_17], %19 {strides = array<i32>} : memref<1x1x8xf32, #tpu.memory_space<vmem>>, vector<1x1x8xf32>,
    return
  }
  func.func @transform_0(%arg0: i32, %arg1: i32) -> (i32, i32) {
    %c2_i32 = arith.constant 2 : i32
    %0 = arith.muli %arg0, %c2_i32 : i32
    %1 = arith.addi %0, %arg1 : i32
    %c0_i32 = arith.constant 0 : i32
    %c0_i32_0 = arith.constant 0 : i32
    return %1, %c0_i32 : i32, i32
  }
  func.func @transform_1(%arg0: i32, %arg1: i32) -> (i32, i32) {
    %c2_i32 = arith.constant 2 : i32
    %0 = arith.muli %arg0, %c2_i32 : i32
    %1 = arith.addi %0, %arg1 : i32
    %c0_i32 = arith.constant 0 : i32
    %c0_i32_0 = arith.constant 0 : i32
    return %1, %c0_i32 : i32, i32
  }
  func.func @transform_2(%arg0: i32, %arg1: i32) -> (i32, i32) {
    %c0_i32 = arith.constant 0 : i32
    %c0_i32_0 = arith.constant 0 : i32
    %c0_i32_1 = arith.constant 0 : i32
    return %c0_i32, %c0_i32_0 : i32, i32
  }
  func.func @transform_3(%arg0: i32, %arg1: i32) -> (i32, i32) {
    %c0_i32 = arith.constant 0 : i32
    %c0_i32_0 = arith.constant 0 : i32
    %c0_i32_1 = arith.constant 0 : i32
    return %c0_i32, %c0_i32_0 : i32, i32
  }
  func.func @transform_4(%arg0: i32, %arg1: i32) -> (i32, i32) {
    %c0_i32 = arith.constant 0 : i32
    %c0_i32_0 = arith.constant 0 : i32
    %c0_i32_1 = arith.constant 0 : i32
    return %c0_i32, %c0_i32_0 : i32, i32
  }
  func.func @transform_5(%arg0: i32, %arg1: i32) -> (i32, i32, i32) {
    %c0_i32 = arith.constant 0 : i32
    %c0_i32_0 = arith.constant 0 : i32
    %c0_i32_1 = arith.constant 0 : i32
    return %arg0, %c0_i32, %c0_i32_0 : i32, i32, i32
  }
}

</mosaic_0001>

<llo_original>
// kernel: tpu_custom_call.1
$region0: #{tpu_custom_call.1}
  #allocation0 [shape = 'u32[]', space=smem, size = 0x4, offset = 0x4, fixed_abs, tag = 'smem constant byte address 0x4 - core index']
  #allocation1 [shape = 'u32[144,128]{1,0:T(1,128)}', space=vmem, size = 0x12000, scoped, tag = 'internal scratch']
  %s0 = inlined_call_operand.vmem [shape: f32[512,128], index: 0, kind: input, shape index: {}]
  %s1 = inlined_call_operand.vmem [shape: f32[512,32], index: 1, kind: input, shape index: {}]
  %s2 = inlined_call_operand.vmem [shape: f32[128,256], index: 2, kind: input, shape index: {}]
  %s3 = inlined_call_operand.vmem [shape: f32[1,256], index: 3, kind: input, shape index: {}]
  %s4 = inlined_call_operand.vmem [shape: f32[256,8], index: 4, kind: input, shape index: {}]
  %s5 = inlined_call_operand.hbm [shape: f32[2,1,8], index: 5, kind: output, shape index: {}]
  %s6 = sld [smem:[#allocation0]]
  $region57: #{tpu_custom_call.1} parent=0
    _
  %s8 = ssub.s32 1, %s6
  %s9 = scalar_select 0, %s8, %s6
  $region1: #{tpu_custom_call.1} parent=0
    #allocation2 [shape = 'u8[1024]{0}', space=vmem, size = 0x400, scoped, tag = 'output window, operand 0']
    #allocation3 [shape = 's32[2]{0}', space=sflag, size = 0x8, scoped, tag = 'scoped memory for tpu_custom_call.1']
    %10 = vsyncpa [#allocation3], 0
    %s11 = scalar_lea.sflag [#allocation3], 1
    %12 = vsyncpa %s11, 0
    loop: start=0, step=1, limit=6
    $region2: #{tpu_custom_call.1} parent=1 // loop_pre_header
      _
    $region3: #{tpu_custom_call.1} parent=1 // loop_header
      %s14 = sphi 0, %s18
      %p15 = scmp.ge.s32.totalorder %s14, 6
      %s21 = sphi 0, %s33
      %s22 = sphi 0, %s29
      %s23 = sphi 0, %s21
      %s24 = sphi 0, %s22
      %s25 = sphi 0, %s23
      %s26 = sphi 0, %s24
      %s40 = sphi 0, %s42
      %s43 = sphi 0, %s40
      %s44 = sphi 0, %s43
      %s60 = sphi 0, %s44
      %s70 = sphi 0, %s72
      %s73 = sphi 0, %s70
      %s74 = sphi 0, %s73
      %s90 = sphi 0, %s74
      %s94 = sphi 0, %s94
      %s96 = sphi 0, %s94
      %s97 = sphi 0, %s96
      %s111 = sphi 0, %s97
      %s115 = sphi 0, %s115
      %s117 = sphi 0, %s115
      %s118 = sphi 0, %s117
      %s132 = sphi 0, %s118
      %s136 = sphi 0, %s136
      %s138 = sphi 0, %s136
      %s139 = sphi 0, %s138
      %s153 = sphi 0, %s139
      %s159 = sphi 0, %s161
      %s162 = sphi 0, %s159
      %s163 = sphi 0, %s162
      %s179 = sphi 0, %s163
    $region4: #{tpu_custom_call.1} parent=1 // loop_header_branch
      %17 = sbr.rel (%p15) target = $region8
    $region5: #{tpu_custom_call.1} parent=1 // loop_body
      %s19 = ssub.s32 %s14, 1
      %s20 = ssub.s32 %s14, 2
      %s27 = sadd.s32 1, %s22
      %p28 = scmp.ge.s32.totalorder %s27, 2
      %s29 = scalar_select %p28, 0, %s27
      %s30 = sadd.s32 1, %s21
      %s31 = scalar_select %p28, %s30, %s21
      %p32 = scmp.ge.s32.totalorder %s31, 2
      %s33 = scalar_select %p32, 0, %s31
      %s34 = smul.u32 %s21, 2
      %s35 = sadd.s32 %s34, %s22
      %s36 = smul.u32 %s33, 2
      %s37 = sadd.s32 %s36, %s29
      %s38 = ssub.s32 %s35, %s37
      %p39 = scmp.eq.s32.totalorder %s38, 0
      %s41 = sadd.s32 %s40, 1
      %s42 = scalar_select %p39, %s40, %s41
      %p45 = pneg %p39
      %p46 = scmp.eq.s32.totalorder %s14, 3
      %p47 = por %p45, %p46
      %p48 = scmp.ne.s32.totalorder %s40, %s43
      %p49 = scmp.eq.s32.totalorder %s14, 0
      %p50 = por %p48, %p49
      %p51 = scmp.ne.s32.totalorder %s40, %s43
      %p52 = scmp.eq.s32.totalorder %s19, 3
      %p53 = por %p51, %p52
      %p54 = scmp.ne.s32.totalorder %s43, %s44
      %p55 = scmp.eq.s32.totalorder %s19, 0
      %p56 = por %p54, %p55
      %p57 = scmp.ne.s32.totalorder %s43, %s44
      %p58 = scmp.eq.s32.totalorder %s20, 3
      %p59 = por %p57, %p58
      %p61 = scmp.ne.s32.totalorder %s44, %s60
      %p62 = scmp.eq.s32.totalorder %s20, 0
      %p63 = por %p61, %p62
      %s64 = smul.u32 %s21, 2
      %s65 = sadd.s32 %s64, %s22
      %s66 = smul.u32 %s33, 2
      %s67 = sadd.s32 %s66, %s29
      %s68 = ssub.s32 %s65, %s67
      %p69 = scmp.eq.s32.totalorder %s68, 0
      %s71 = sadd.s32 %s70, 1
      %s72 = scalar_select %p69, %s70, %s71
      %p75 = pneg %p69
      %p76 = scmp.eq.s32.totalorder %s14, 3
      %p77 = por %p75, %p76
      %p78 = scmp.ne.s32.totalorder %s70, %s73
      %p79 = scmp.eq.s32.totalorder %s14, 0
      %p80 = por %p78, %p79
      %p81 = scmp.ne.s32.totalorder %s70, %s73
      %p82 = scmp.eq.s32.totalorder %s19, 3
      %p83 = por %p81, %p82
      %p84 = scmp.ne.s32.totalorder %s73, %s74
      %p85 = scmp.eq.s32.totalorder %s19, 0
      %p86 = por %p84, %p85
      %p87 = scmp.ne.s32.totalorder %s73, %s74
      %p88 = scmp.eq.s32.totalorder %s20, 3
      %p89 = por %p87, %p88
      %p91 = scmp.ne.s32.totalorder %s74, %s90
      %p92 = scmp.eq.s32.totalorder %s20, 0
      %p93 = por %p91, %p92
      %s95 = sadd.s32 %s94, 1
      %p98 = scmp.eq.s32.totalorder %s14, 3
      %p99 = scmp.ne.s32.totalorder %s94, %s96
      %p100 = scmp.eq.s32.totalorder %s14, 0
      %p101 = por %p99, %p100
      %p102 = scmp.ne.s32.totalorder %s94, %s96
      %p103 = scmp.eq.s32.totalorder %s19, 3
      %p104 = por %p102, %p103
      %p105 = scmp.ne.s32.totalorder %s96, %s97
      %p106 = scmp.eq.s32.totalorder %s19, 0
      %p107 = por %p105, %p106
      %p108 = scmp.ne.s32.totalorder %s96, %s97
      %p109 = scmp.eq.s32.totalorder %s20, 3
      %p110 = por %p108, %p109
      %p112 = scmp.ne.s32.totalorder %s97, %s111
      %p113 = scmp.eq.s32.totalorder %s20, 0
      %p114 = por %p112, %p113
      %s116 = sadd.s32 %s115, 1
      %p119 = scmp.eq.s32.totalorder %s14, 3
      %p120 = scmp.ne.s32.totalorder %s115, %s117
      %p121 = scmp.eq.s32.totalorder %s14, 0
      %p122 = por %p120, %p121
      %p123 = scmp.ne.s32.totalorder %s115, %s117
      %p124 = scmp.eq.s32.totalorder %s19, 3
      %p125 = por %p123, %p124
      %p126 = scmp.ne.s32.totalorder %s117, %s118
      %p127 = scmp.eq.s32.totalorder %s19, 0
      %p128 = por %p126, %p127
      %p129 = scmp.ne.s32.totalorder %s117, %s118
      %p130 = scmp.eq.s32.totalorder %s20, 3
      %p131 = por %p129, %p130
      %p133 = scmp.ne.s32.totalorder %s118, %s132
      %p134 = scmp.eq.s32.totalorder %s20, 0
      %p135 = por %p133, %p134
      %s137 = sadd.s32 %s136, 1
      %p140 = scmp.eq.s32.totalorder %s14, 3
      %p141 = scmp.ne.s32.totalorder %s136, %s138
      %p142 = scmp.eq.s32.totalorder %s14, 0
      %p143 = por %p141, %p142
      %p144 = scmp.ne.s32.totalorder %s136, %s138
      %p145 = scmp.eq.s32.totalorder %s19, 3
      %p146 = por %p144, %p145
      %p147 = scmp.ne.s32.totalorder %s138, %s139
      %p148 = scmp.eq.s32.totalorder %s19, 0
      %p149 = por %p147, %p148
      %p150 = scmp.ne.s32.totalorder %s138, %s139
      %p151 = scmp.eq.s32.totalorder %s20, 3
      %p152 = por %p150, %p151
      %p154 = scmp.ne.s32.totalorder %s139, %s153
      %p155 = scmp.eq.s32.totalorder %s20, 0
      %p156 = por %p154, %p155
      %s157 = ssub.s32 %s21, %s33
      %p158 = scmp.eq.s32.totalorder %s157, 0
      %s160 = sadd.s32 %s159, 1
      %s161 = scalar_select %p158, %s159, %s160
      %p164 = pneg %p158
      %p165 = scmp.eq.s32.totalorder %s14, 3
      %p166 = por %p164, %p165
      %p167 = scmp.ne.s32.totalorder %s159, %s162
      %p168 = scmp.eq.s32.totalorder %s14, 0
      %p169 = por %p167, %p168
      %p170 = scmp.ne.s32.totalorder %s159, %s162
      %p171 = scmp.eq.s32.totalorder %s19, 3
      %p172 = por %p170, %p171
      %p173 = scmp.ne.s32.totalorder %s162, %s163
      %p174 = scmp.eq.s32.totalorder %s19, 0
      %p175 = por %p173, %p174
      %p176 = scmp.ne.s32.totalorder %s162, %s163
      %p177 = scmp.eq.s32.totalorder %s20, 3
      %p178 = por %p176, %p177
      %p180 = scmp.ne.s32.totalorder %s163, %s179
      %p181 = scmp.eq.s32.totalorder %s20, 0
      %p182 = por %p180, %p181
      %p183 = scmp.le.s32.totalorder 1, %s14
      %p184 = scmp.lt.s32.totalorder %s14, 5
      %p185 = pnand %p183, %p184
      %p186 = pneg %p185
      // Predicated region
      $region9: #{tpu_custom_call.1} parent=5 // pred_check
        _
      $region10: #{tpu_custom_call.1} parent=5 // pred_check_branch
        %188 = sbr.rel (%p185) target = $region12
      $region11: #{tpu_custom_call.1} parent=5 // pred_region
        %s189 = ssub.s32 %s14, 1
        // Predicated region
        $region13: #{tpu_custom_call.1} parent=11 // pred_check
          %p190 = pneg %p107
        $region14: #{tpu_custom_call.1} parent=11 // pred_check_branch
          %192 = sbr.rel (%p190) target = $region16
        $region15: #{tpu_custom_call.1} parent=11 // pred_region
          _
        $region16: #{tpu_custom_call.1} parent=11 // pred_fallthru
          _
        // Predicated region
        $region17: #{tpu_custom_call.1} parent=11 // pred_check
          %p193 = pneg %p128
        $region18: #{tpu_custom_call.1} parent=11 // pred_check_branch
          %195 = sbr.rel (%p193) target = $region20
        $region19: #{tpu_custom_call.1} parent=11 // pred_region
          _
        $region20: #{tpu_custom_call.1} parent=11 // pred_fallthru
          _
        // Predicated region
        $region21: #{tpu_custom_call.1} parent=11 // pred_check
          %p196 = pneg %p149
        $region22: #{tpu_custom_call.1} parent=11 // pred_check_branch
          %198 = sbr.rel (%p196) target = $region24
        $region23: #{tpu_custom_call.1} parent=11 // pred_region
          _
        $region24: #{tpu_custom_call.1} parent=11 // pred_fallthru
          _
      $region12: #{tpu_custom_call.1} parent=5 // pred_fallthru
        _
      %p199 = scmp.lt.s32.totalorder %s14, 4
      // Predicated region
      $region25: #{tpu_custom_call.1} parent=5 // pred_check
        %p200 = pneg %p199
      $region26: #{tpu_custom_call.1} parent=5 // pred_check_branch
        %202 = sbr.rel (%p200) target = $region28
      $region27: #{tpu_custom_call.1} parent=5 // pred_region
        // Predicated region
        $region29: #{tpu_custom_call.1} parent=27 // pred_check
          %p203 = pneg %p50
        $region30: #{tpu_custom_call.1} parent=27 // pred_check_branch
          %205 = sbr.rel (%p203) target = $region32
        $region31: #{tpu_custom_call.1} parent=27 // pred_region
          %s206 = smul.u32 %s21, 2
          %s207 = sadd.s32 %s206, %s22
          %s208 = smul.u32 16, %s207
          %p209 = scmp.lt.s32.totalorder %s208, 63
          %s210 = scalar_select %p209, %s208, 63
          %s211 = smul.addr %s210, 8
          %s212 = scalar_lea.vmem %s0, %s211
          %s213 = smul.u32 %s21, 2
          %s214 = sadd.s32 %s213, %s22
          %s215 = smul.u32 16, %s214
        $region32: #{tpu_custom_call.1} parent=27 // pred_fallthru
          _
        // Predicated region
        $region33: #{tpu_custom_call.1} parent=27 // pred_check
          %p216 = pneg %p80
        $region34: #{tpu_custom_call.1} parent=27 // pred_check_branch
          %218 = sbr.rel (%p216) target = $region36
        $region35: #{tpu_custom_call.1} parent=27 // pred_region
          %s219 = smul.u32 %s21, 2
          %s220 = sadd.s32 %s219, %s22
          %s221 = smul.u32 16, %s220
          %p222 = scmp.lt.s32.totalorder %s221, 63
          %s223 = scalar_select %p222, %s221, 63
          %s224 = smul.addr %s223, 8
          %s225 = scalar_lea.vmem %s1, %s224
          %s226 = smul.u32 %s21, 2
          %s227 = sadd.s32 %s226, %s22
          %s228 = smul.u32 16, %s227
        $region36: #{tpu_custom_call.1} parent=27 // pred_fallthru
          _
      $region28: #{tpu_custom_call.1} parent=5 // pred_fallthru
        _
      %p229 = scmp.le.s32.totalorder 1, %s14
      %p230 = scmp.lt.s32.totalorder %s14, 5
      %p231 = pnand %p229, %p230
      %p232 = pneg %p231
      // Predicated region
      $region37: #{tpu_custom_call.1} parent=5 // pred_check
        _
      $region38: #{tpu_custom_call.1} parent=5 // pred_check_branch
        %234 = sbr.rel (%p231) target = $region40
      $region39: #{tpu_custom_call.1} parent=5 // pred_region
        %s235 = ssub.s32 %s14, 1
        %s236 = smul.u32 %s23, 2
        %s237 = sadd.s32 %s236, %s24
        %s238 = smul.u32 16, %s237
        %p239 = scmp.lt.s32.totalorder %s238, 63
        %s240 = scalar_select %p239, %s238, 63
        %s241 = smul.addr %s240, 8
        %s242 = scalar_lea.vmem %s0, %s241
        %p243 = pneg %p56
        %p244 = pneg %p53
        %s245 = smul.u32 %s23, 2
        %s246 = sadd.s32 %s245, %s24
        %s247 = smul.u32 16, %s246
        %p248 = scmp.lt.s32.totalorder %s247, 63
        %s249 = scalar_select %p248, %s247, 63
        %s250 = smul.addr %s249, 8
        %s251 = scalar_lea.vmem %s1, %s250
        %p252 = pneg %p86
        %p253 = pneg %p83
        %p254 = pneg %p107
        %p255 = pneg %p104
        %p256 = pneg %p128
        %p257 = pneg %p125
        %p258 = pneg %p149
        %p259 = pneg %p146
        %p260 = pneg %p175
        %p261 = pneg %p172
        %s262 = sand.u32 %s162, 1
        %s263 = scalar_lea.sflag [#allocation3], %s262
        %s264 = sand.u32 %s162, 1
        %s265 = scalar_lea.vmem [#allocation2], %s264
        %s266 = smul.u32 %s23, 2
        %s267 = sadd.s32 %s266, %s24
        %s268 = smul.u32 16, %s267
        %p269 = scmp.lt.s32.totalorder %s268, 63
        %s270 = scalar_select %p269, %s268, 63
        %s271 = smul.addr %s270, 8
        %s272 = scalar_lea.vmem %s0, %s271
        %s273 = smul.u32 %s23, 2
        %s274 = sadd.s32 %s273, %s24
        %s275 = smul.u32 16, %s274
        %s276 = smul.u32 %s23, 2
        %s277 = sadd.s32 %s276, %s24
        %s278 = smul.u32 16, %s277
        %p279 = scmp.lt.s32.totalorder %s278, 63
        %s280 = scalar_select %p279, %s278, 63
        %s281 = smul.addr %s280, 8
        %s282 = scalar_lea.vmem %s1, %s281
        %s283 = smul.u32 %s23, 2
        %s284 = sadd.s32 %s283, %s24
        %s285 = smul.u32 16, %s284
        %p286 = scmp.eq.s32.totalorder %s24, 0
        // Predicated region
        $region41: #{tpu_custom_call.1} parent=39 // pred_check
          %p287 = pneg %p286
        $region42: #{tpu_custom_call.1} parent=39 // pred_check_branch
          %289 = sbr.rel (%p287) target = $region44
        $region43: #{tpu_custom_call.1} parent=39 // pred_region
          %vm290 = vcmask 57344
          %291 = vst.msk [vmem:[%s265] sm:$0x1] %vm290, 0.0
        $region44: #{tpu_custom_call.1} parent=39 // pred_fallthru
          _
        %v292 = vld [vmem:[%s272] sm:$0xff]
        %v293 = vld [vmem:[%s272 + $0x8] sm:$0xff]
        %v294 = vld [vmem:[%s272 + $0x10] sm:$0xff]
        %v295 = vld [vmem:[%s272 + $0x18] sm:$0xff]
        %v296 = vld [vmem:[%s272 + $0x20] sm:$0xff]
        %v297 = vld [vmem:[%s272 + $0x28] sm:$0xff]
        %v298 = vld [vmem:[%s272 + $0x30] sm:$0xff]
        %v299 = vld [vmem:[%s272 + $0x38] sm:$0xff]
        %v300 = vld [vmem:[%s272 + $0x40] sm:$0xff]
        %v301 = vld [vmem:[%s272 + $0x48] sm:$0xff]
        %v302 = vld [vmem:[%s272 + $0x50] sm:$0xff]
        %v303 = vld [vmem:[%s272 + $0x58] sm:$0xff]
        %v304 = vld [vmem:[%s272 + $0x60] sm:$0xff]
        %v305 = vld [vmem:[%s272 + $0x68] sm:$0xff]
        %v306 = vld [vmem:[%s272 + $0x70] sm:$0xff]
        %v307 = vld [vmem:[%s272 + $0x78] sm:$0xff]
        %v308 = vld [vmem:[%s2] sm:$0xff]
        %v309 = vld [vmem:[%s2 + $0x8] sm:$0xff]
        %v310 = vld [vmem:[%s2 + $0x10] sm:$0xff]
        %v311 = vld [vmem:[%s2 + $0x18] sm:$0xff]
        %v312 = vld [vmem:[%s2 + $0x20] sm:$0xff]
        %v313 = vld [vmem:[%s2 + $0x28] sm:$0xff]
        %v314 = vld [vmem:[%s2 + $0x30] sm:$0xff]
        %v315 = vld [vmem:[%s2 + $0x38] sm:$0xff]
        %v316 = vld [vmem:[%s2 + $0x40] sm:$0xff]
        %v317 = vld [vmem:[%s2 + $0x48] sm:$0xff]
        %v318 = vld [vmem:[%s2 + $0x50] sm:$0xff]
        %v319 = vld [vmem:[%s2 + $0x58] sm:$0xff]
        %v320 = vld [vmem:[%s2 + $0x60] sm:$0xff]
        %v321 = vld [vmem:[%s2 + $0x68] sm:$0xff]
        %v322 = vld [vmem:[%s2 + $0x70] sm:$0xff]
        %v323 = vld [vmem:[%s2 + $0x78] sm:$0xff]
        %v324 = vld [vmem:[%s2 + $0x80] sm:$0xff]
        %v325 = vld [vmem:[%s2 + $0x88] sm:$0xff]
        %v326 = vld [vmem:[%s2 + $0x90] sm:$0xff]
        %v327 = vld [vmem:[%s2 + $0x98] sm:$0xff]
        %v328 = vld [vmem:[%s2 + $0xa0] sm:$0xff]
        %v329 = vld [vmem:[%s2 + $0xa8] sm:$0xff]
        %v330 = vld [vmem:[%s2 + $0xb0] sm:$0xff]
        %v331 = vld [vmem:[%s2 + $0xb8] sm:$0xff]
        %v332 = vld [vmem:[%s2 + $0xc0] sm:$0xff]
        %v333 = vld [vmem:[%s2 + $0xc8] sm:$0xff]
        %v334 = vld [vmem:[%s2 + $0xd0] sm:$0xff]
        %v335 = vld [vmem:[%s2 + $0xd8] sm:$0xff]
        %v336 = vld [vmem:[%s2 + $0xe0] sm:$0xff]
        %v337 = vld [vmem:[%s2 + $0xe8] sm:$0xff]
        %v338 = vld [vmem:[%s2 + $0xf0] sm:$0xff]
        %v339 = vld [vmem:[%s2 + $0xf8] sm:$0xff]
        %v340 = vld [vmem:[%s3] sm:$0x3]
        %v342 = vlaneseq
        %v343 = vshrl.u32 %v342, 7
        %v344 = vsub.s32 0, %v343
        %v345 = vrot.slane %v340, %v344
        %v346 = vlaneseq
        %v347 = vshrl.u32 %v346, 7
        %v348 = vsub.s32 1, %v347
        %v349 = vrot.slane %v340, %v348
        %352 = vmatprep.subr.mxu0 %v309
        %353 = vmatpush1.msra.mxu0 %v308
        %354 = vmatprep.subr.mxu0 %v311
        %355 = vmatpush1.msra.mxu0 %v310
        %356 = vmatprep.subr.mxu0 %v313
        %357 = vmatpush1.msra.mxu0 %v312
        %358 = vmatprep.subr.mxu0 %v315
        %359 = vmatpush1.msra.mxu0 %v314
        %360 = vmatprep.subr.mxu0 %v317
        %361 = vmatpush1.msra.mxu0 %v316
        %362 = vmatprep.subr.mxu0 %v319
        %363 = vmatpush1.msra.mxu0 %v318
        %364 = vmatprep.subr.mxu0 %v321
        %365 = vmatpush1.msra.mxu0 %v320
        %366 = vmatprep.subr.mxu0 %v323
        %367 = vmatpush1.msra.mxu0 %v322
        %368 = vmatprep.subr.mxu0 %v325
        %369 = vmatpush1.msra.mxu0 %v324
        %370 = vmatprep.subr.mxu0 %v327
        %371 = vmatpush1.msra.mxu0 %v326
        %372 = vmatprep.subr.mxu0 %v329
        %373 = vmatpush1.msra.mxu0 %v328
        %374 = vmatprep.subr.mxu0 %v331
        %375 = vmatpush1.msra.mxu0 %v330
        %376 = vmatprep.subr.mxu0 %v333
        %377 = vmatpush1.msra.mxu0 %v332
        %378 = vmatprep.subr.mxu0 %v335
        %379 = vmatpush1.msra.mxu0 %v334
        %380 = vmatprep.subr.mxu0 %v337
        %381 = vmatpush1.msra.mxu0 %v336
        %382 = vmatprep.subr.mxu0 %v339
        %383 = vmatpush1.msra.mxu0 %v338
        %384 = vmatprep.subr.mxu0 0.0
        %385 = vmatpush1.msra.mxu0 0.0
        %386 = vmatprep.subr.mxu0 0.0
        %387 = vmatpush1.msra.mxu0 0.0
        %388 = vmatprep.subr.mxu0 0.0
        %389 = vmatpush1.msra.mxu0 0.0
        %390 = vmatprep.subr.mxu0 0.0
        %391 = vmatpush1.msra.mxu0 0.0
        %392 = vmatprep.subr.mxu0 0.0
        %393 = vmatpush1.msra.mxu0 0.0
        %394 = vmatprep.subr.mxu0 0.0
        %395 = vmatpush1.msra.mxu0 0.0
        %396 = vmatprep.subr.mxu0 0.0
        %397 = vmatpush1.msra.mxu0 0.0
        %398 = vmatprep.subr.mxu0 0.0
        %399 = vmatpush1.msra.mxu0 0.0
        %400 = vmatprep.subr.mxu0 0.0
        %401 = vmatpush1.msra.mxu0 0.0
        %402 = vmatprep.subr.mxu0 0.0
        %403 = vmatpush1.msra.mxu0 0.0
        %404 = vmatprep.subr.mxu0 0.0
        %405 = vmatpush1.msra.mxu0 0.0
        %406 = vmatprep.subr.mxu0 0.0
        %407 = vmatpush1.msra.mxu0 0.0
        %408 = vmatprep.subr.mxu0 0.0
        %409 = vmatpush1.msra.mxu0 0.0
        %410 = vmatprep.subr.mxu0 0.0
        %411 = vmatpush1.msra.mxu0 0.0
        %412 = vmatprep.subr.mxu0 0.0
        %413 = vmatpush1.msra.mxu0 0.0
        %414 = vmatprep.subr.mxu0 0.0
        %415 = vmatpush1.msra.mxu0 0.0
        %416 = vmatprep.mubr.f32.mxu0 0.0
        %417 = vmatmul.mubr.f32.gmra.mrb[0].mxu0 %v292
        %v418 = vpop.f32.mrb[0].mxu0
        %v419 = vadd.f32 %v345, %v418
        %v420 = vpop.f32.mrb[0].mxu0
        %v421 = vadd.f32 %v349, %v420
        %422 = vmatprep.mubr.f32.mxu0 0.0
        %423 = vmatmul.mubr.f32.gmra.mrb[0].mxu0 %v293
        %v424 = vpop.f32.mrb[0].mxu0
        %v425 = vadd.f32 %v345, %v424
        %v426 = vpop.f32.mrb[0].mxu0
        %v427 = vadd.f32 %v349, %v426
        %428 = vmatprep.mubr.f32.mxu0 0.0
        %429 = vmatmul.mubr.f32.gmra.mrb[0].mxu0 %v294
        %v430 = vpop.f32.mrb[0].mxu0
        %v431 = vadd.f32 %v345, %v430
        %v432 = vpop.f32.mrb[0].mxu0
        %v433 = vadd.f32 %v349, %v432
        %434 = vmatprep.mubr.f32.mxu0 0.0
        %435 = vmatmul.mubr.f32.gmra.mrb[0].mxu0 %v295
        %v436 = vpop.f32.mrb[0].mxu0
        %v437 = vadd.f32 %v345, %v436
        %v438 = vpop.f32.mrb[0].mxu0
        %v439 = vadd.f32 %v349, %v438
        %440 = vmatprep.mubr.f32.mxu0 0.0
        %441 = vmatmul.mubr.f32.gmra.mrb[0].mxu0 %v296
        %v442 = vpop.f32.mrb[0].mxu0
        %v443 = vadd.f32 %v345, %v442
        %v444 = vpop.f32.mrb[0].mxu0
        %v445 = vadd.f32 %v349, %v444
        %446 = vmatprep.mubr.f32.mxu0 0.0
        %447 = vmatmul.mubr.f32.gmra.mrb[0].mxu0 %v297
        %v448 = vpop.f32.mrb[0].mxu0
        %v449 = vadd.f32 %v345, %v448
        %v450 = vpop.f32.mrb[0].mxu0
        %v451 = vadd.f32 %v349, %v450
        %452 = vmatprep.mubr.f32.mxu0 0.0
        %453 = vmatmul.mubr.f32.gmra.mrb[0].mxu0 %v298
        %v454 = vpop.f32.mrb[0].mxu0
        %v455 = vadd.f32 %v345, %v454
        %v456 = vpop.f32.mrb[0].mxu0
        %v457 = vadd.f32 %v349, %v456
        %458 = vmatprep.mubr.f32.mxu0 0.0
        %459 = vmatmul.mubr.f32.gmra.mrb[0].mxu0 %v299
        %v460 = vpop.f32.mrb[0].mxu0
        %v461 = vadd.f32 %v345, %v460
        %v462 = vpop.f32.mrb[0].mxu0
        %v463 = vadd.f32 %v349, %v462
        %464 = vmatprep.mubr.f32.mxu0 0.0
        %465 = vmatmul.mubr.f32.gmra.mrb[0].mxu0 %v300
        %v466 = vpop.f32.mrb[0].mxu0
        %v467 = vadd.f32 %v345, %v466
        %v468 = vpop.f32.mrb[0].mxu0
        %v469 = vadd.f32 %v349, %v468
        %470 = vmatprep.mubr.f32.mxu0 0.0
        %471 = vmatmul.mubr.f32.gmra.mrb[0].mxu0 %v301
        %v472 = vpop.f32.mrb[0].mxu0
        %v473 = vadd.f32 %v345, %v472
        %v474 = vpop.f32.mrb[0].mxu0
        %v475 = vadd.f32 %v349, %v474
        %476 = vmatprep.mubr.f32.mxu0 0.0
        %477 = vmatmul.mubr.f32.gmra.mrb[0].mxu0 %v302
        %v478 = vpop.f32.mrb[0].mxu0
        %v479 = vadd.f32 %v345, %v478
        %v480 = vpop.f32.mrb[0].mxu0
        %v481 = vadd.f32 %v349, %v480
        %482 = vmatprep.mubr.f32.mxu0 0.0
        %483 = vmatmul.mubr.f32.gmra.mrb[0].mxu0 %v303
        %v484 = vpop.f32.mrb[0].mxu0
        %v485 = vadd.f32 %v345, %v484
        %v486 = vpop.f32.mrb[0].mxu0
        %v487 = vadd.f32 %v349, %v486
        %488 = vmatprep.mubr.f32.mxu0 0.0
        %489 = vmatmul.mubr.f32.gmra.mrb[0].mxu0 %v304
        %v490 = vpop.f32.mrb[0].mxu0
        %v491 = vadd.f32 %v345, %v490
        %v492 = vpop.f32.mrb[0].mxu0
        %v493 = vadd.f32 %v349, %v492
        %494 = vmatprep.mubr.f32.mxu0 0.0
        %495 = vmatmul.mubr.f32.gmra.mrb[0].mxu0 %v305
        %v496 = vpop.f32.mrb[0].mxu0
        %v497 = vadd.f32 %v345, %v496
        %v498 = vpop.f32.mrb[0].mxu0
        %v499 = vadd.f32 %v349, %v498
        %500 = vmatprep.mubr.f32.mxu0 0.0
        %501 = vmatmul.mubr.f32.gmra.mrb[0].mxu0 %v306
        %v502 = vpop.f32.mrb[0].mxu0
        %v503 = vadd.f32 %v345, %v502
        %v504 = vpop.f32.mrb[0].mxu0
        %v505 = vadd.f32 %v349, %v504
        %506 = vmatprep.mubr.f32.mxu0 0.0
        %507 = vmatmul.mubr.f32.gmra.mrb[0].mxu0 %v307
        %v508 = vpop.f32.mrb[0].mxu0
        %v509 = vadd.f32 %v345, %v508
        %v510 = vpop.f32.mrb[0].mxu0
        %v511 = vadd.f32 %v349, %v510
        %512 = vdwg.mxu0
        %v513 = vtanh.pop %v419
        %v514 = vtanh.pop %v421
        %v515 = vtanh.pop %v425
        %v516 = vtanh.pop %v427
        %v517 = vtanh.pop %v431
        %v518 = vtanh.pop %v433
        %v519 = vtanh.pop %v437
        %v520 = vtanh.pop %v439
        %v521 = vtanh.pop %v443
        %v522 = vtanh.pop %v445
        %v523 = vtanh.pop %v449
        %v524 = vtanh.pop %v451
        %v525 = vtanh.pop %v455
        %v526 = vtanh.pop %v457
        %v527 = vtanh.pop %v461
        %v528 = vtanh.pop %v463
        %v529 = vtanh.pop %v467
        %v530 = vtanh.pop %v469
        %v531 = vtanh.pop %v473
        %v532 = vtanh.pop %v475
        %v533 = vtanh.pop %v479
        %v534 = vtanh.pop %v481
        %v535 = vtanh.pop %v485
        %v536 = vtanh.pop %v487
        %v537 = vtanh.pop %v491
        %v538 = vtanh.pop %v493
        %v539 = vtanh.pop %v497
        %v540 = vtanh.pop %v499
        %v541 = vtanh.pop %v503
        %v542 = vtanh.pop %v505
        %v543 = vtanh.pop %v509
        %v544 = vtanh.pop %v511
        %v545 = vld [vmem:[%s282] sm:$0xff]
        %v546 = vld [vmem:[%s282 + $0x8] sm:$0xff]
        %v547 = vld [vmem:[%s282 + $0x10] sm:$0xff]
        %v548 = vld [vmem:[%s282 + $0x18] sm:$0xff]
        %v549 = vld [vmem:[%s282 + $0x20] sm:$0xff]
        %v550 = vld [vmem:[%s282 + $0x28] sm:$0xff]
        %v551 = vld [vmem:[%s282 + $0x30] sm:$0xff]
        %v552 = vld [vmem:[%s282 + $0x38] sm:$0xff]
        %v553 = vld [vmem:[%s282 + $0x40] sm:$0xff]
        %v554 = vld [vmem:[%s282 + $0x48] sm:$0xff]
        %v555 = vld [vmem:[%s282 + $0x50] sm:$0xff]
        %v556 = vld [vmem:[%s282 + $0x58] sm:$0xff]
        %v557 = vld [vmem:[%s282 + $0x60] sm:$0xff]
        %v558 = vld [vmem:[%s282 + $0x68] sm:$0xff]
        %v559 = vld [vmem:[%s282 + $0x70] sm:$0xff]
        %v560 = vld [vmem:[%s282 + $0x78] sm:$0xff]
        %577 = vrot.lane.b32.xlu0 %v545, 32
        %v578 = vpop.permute.xlu0 %577
        %579 = vrot.lane.b32.xlu0 %v546, 32
        %v580 = vpop.permute.xlu0 %579
        %581 = vrot.lane.b32.xlu0 %v547, 32
        %v582 = vpop.permute.xlu0 %581
        %583 = vrot.lane.b32.xlu0 %v548, 32
        %v584 = vpop.permute.xlu0 %583
        %585 = vrot.lane.b32.xlu0 %v549, 32
        %v586 = vpop.permute.xlu0 %585
        %587 = vrot.lane.b32.xlu0 %v550, 32
        %v588 = vpop.permute.xlu0 %587
        %589 = vrot.lane.b32.xlu0 %v551, 32
        %v590 = vpop.permute.xlu0 %589
        %591 = vrot.lane.b32.xlu0 %v552, 32
        %v592 = vpop.permute.xlu0 %591
        %593 = vrot.lane.b32.xlu0 %v553, 32
        %v594 = vpop.permute.xlu0 %593
        %595 = vrot.lane.b32.xlu0 %v554, 32
        %v596 = vpop.permute.xlu0 %595
        %597 = vrot.lane.b32.xlu0 %v555, 32
        %v598 = vpop.permute.xlu0 %597
        %599 = vrot.lane.b32.xlu0 %v556, 32
        %v600 = vpop.permute.xlu0 %599
        %601 = vrot.lane.b32.xlu0 %v557, 32
        %v602 = vpop.permute.xlu0 %601
        %603 = vrot.lane.b32.xlu0 %v558, 32
        %v604 = vpop.permute.xlu0 %603
        %605 = vrot.lane.b32.xlu0 %v559, 32
        %v606 = vpop.permute.xlu0 %605
        %607 = vrot.lane.b32.xlu0 %v560, 32
        %v608 = vpop.permute.xlu0 %607
        %625 = vrot.lane.b32.xlu0 %v545, 64
        %v626 = vpop.permute.xlu0 %625
        %627 = vrot.lane.b32.xlu0 %v546, 64
        %v628 = vpop.permute.xlu0 %627
        %629 = vrot.lane.b32.xlu0 %v547, 64
        %v630 = vpop.permute.xlu0 %629
        %631 = vrot.lane.b32.xlu0 %v548, 64
        %v632 = vpop.permute.xlu0 %631
        %633 = vrot.lane.b32.xlu0 %v549, 64
        %v634 = vpop.permute.xlu0 %633
        %635 = vrot.lane.b32.xlu0 %v550, 64
        %v636 = vpop.permute.xlu0 %635
        %637 = vrot.lane.b32.xlu0 %v551, 64
        %v638 = vpop.permute.xlu0 %637
        %639 = vrot.lane.b32.xlu0 %v552, 64
        %v640 = vpop.permute.xlu0 %639
        %641 = vrot.lane.b32.xlu0 %v553, 64
        %v642 = vpop.permute.xlu0 %641
        %643 = vrot.lane.b32.xlu0 %v554, 64
        %v644 = vpop.permute.xlu0 %643
        %645 = vrot.lane.b32.xlu0 %v555, 64
        %v646 = vpop.permute.xlu0 %645
        %647 = vrot.lane.b32.xlu0 %v556, 64
        %v648 = vpop.permute.xlu0 %647
        %649 = vrot.lane.b32.xlu0 %v557, 64
        %v650 = vpop.permute.xlu0 %649
        %651 = vrot.lane.b32.xlu0 %v558, 64
        %v652 = vpop.permute.xlu0 %651
        %653 = vrot.lane.b32.xlu0 %v559, 64
        %v654 = vpop.permute.xlu0 %653
        %655 = vrot.lane.b32.xlu0 %v560, 64
        %v656 = vpop.permute.xlu0 %655
        %673 = vrot.lane.b32.xlu0 %v545, 96
        %v674 = vpop.permute.xlu0 %673
        %675 = vrot.lane.b32.xlu0 %v546, 96
        %v676 = vpop.permute.xlu0 %675
        %677 = vrot.lane.b32.xlu0 %v547, 96
        %v678 = vpop.permute.xlu0 %677
        %679 = vrot.lane.b32.xlu0 %v548, 96
        %v680 = vpop.permute.xlu0 %679
        %681 = vrot.lane.b32.xlu0 %v549, 96
        %v682 = vpop.permute.xlu0 %681
        %683 = vrot.lane.b32.xlu0 %v550, 96
        %v684 = vpop.permute.xlu0 %683
        %685 = vrot.lane.b32.xlu0 %v551, 96
        %v686 = vpop.permute.xlu0 %685
        %687 = vrot.lane.b32.xlu0 %v552, 96
        %v688 = vpop.permute.xlu0 %687
        %689 = vrot.lane.b32.xlu0 %v553, 96
        %v690 = vpop.permute.xlu0 %689
        %691 = vrot.lane.b32.xlu0 %v554, 96
        %v692 = vpop.permute.xlu0 %691
        %693 = vrot.lane.b32.xlu0 %v555, 96
        %v694 = vpop.permute.xlu0 %693
        %695 = vrot.lane.b32.xlu0 %v556, 96
        %v696 = vpop.permute.xlu0 %695
        %697 = vrot.lane.b32.xlu0 %v557, 96
        %v698 = vpop.permute.xlu0 %697
        %699 = vrot.lane.b32.xlu0 %v558, 96
        %v700 = vpop.permute.xlu0 %699
        %701 = vrot.lane.b32.xlu0 %v559, 96
        %v702 = vpop.permute.xlu0 %701
        %703 = vrot.lane.b32.xlu0 %v560, 96
        %v704 = vpop.permute.xlu0 %703
        %vm721 = vcmask 261120
        %v722 = vsel %vm721, %v545, %v578
        %v723 = vsel %vm721, %v546, %v580
        %v724 = vsel %vm721, %v547, %v582
        %v725 = vsel %vm721, %v548, %v584
        %v726 = vsel %vm721, %v549, %v586
        %v727 = vsel %vm721, %v550, %v588
        %v728 = vsel %vm721, %v551, %v590
        %v729 = vsel %vm721, %v552, %v592
        %v730 = vsel %vm721, %v553, %v594
        %v731 = vsel %vm721, %v554, %v596
        %v732 = vsel %vm721, %v555, %v598
        %v733 = vsel %vm721, %v556, %v600
        %v734 = vsel %vm721, %v557, %v602
        %v735 = vsel %vm721, %v558, %v604
        %v736 = vsel %vm721, %v559, %v606
        %v737 = vsel %vm721, %v560, %v608
        %vm738 = vcmask 523264
        %v739 = vsel %vm738, %v722, %v626
        %v740 = vsel %vm738, %v723, %v628
        %v741 = vsel %vm738, %v724, %v630
        %v742 = vsel %vm738, %v725, %v632
        %v743 = vsel %vm738, %v726, %v634
        %v744 = vsel %vm738, %v727, %v636
        %v745 = vsel %vm738, %v728, %v638
        %v746 = vsel %vm738, %v729, %v640
        %v747 = vsel %vm738, %v730, %v642
        %v748 = vsel %vm738, %v731, %v644
        %v749 = vsel %vm738, %v732, %v646
        %v750 = vsel %vm738, %v733, %v648
        %v751 = vsel %vm738, %v734, %v650
        %v752 = vsel %vm738, %v735, %v652
        %v753 = vsel %vm738, %v736, %v654
        %v754 = vsel %vm738, %v737, %v656
        %vm755 = vcmask 785408
        %v756 = vsel %vm755, %v739, %v674
        %v757 = vsel %vm755, %v740, %v676
        %v758 = vsel %vm755, %v741, %v678
        %v759 = vsel %vm755, %v742, %v680
        %v760 = vsel %vm755, %v743, %v682
        %v761 = vsel %vm755, %v744, %v684
        %v762 = vsel %vm755, %v745, %v686
        %v763 = vsel %vm755, %v746, %v688
        %v764 = vsel %vm755, %v747, %v690
        %v765 = vsel %vm755, %v748, %v692
        %v766 = vsel %vm755, %v749, %v694
        %v767 = vsel %vm755, %v750, %v696
        %v768 = vsel %vm755, %v751, %v698
        %v769 = vsel %vm755, %v752, %v700
        %v770 = vsel %vm755, %v753, %v702
        %v771 = vsel %vm755, %v754, %v704
        %v772 = vmul.f32 %v513, %v756
        %v773 = vmul.f32 %v514, %v756
        %v774 = vmul.f32 %v515, %v757
        %v775 = vmul.f32 %v516, %v757
        %v776 = vmul.f32 %v517, %v758
        %v777 = vmul.f32 %v518, %v758
        %v778 = vmul.f32 %v519, %v759
        %v779 = vmul.f32 %v520, %v759
        %v780 = vmul.f32 %v521, %v760
        %v781 = vmul.f32 %v522, %v760
        %v782 = vmul.f32 %v523, %v761
        %v783 = vmul.f32 %v524, %v761
        %v784 = vmul.f32 %v525, %v762
        %v785 = vmul.f32 %v526, %v762
        %v786 = vmul.f32 %v527, %v763
        %v787 = vmul.f32 %v528, %v763
        %v788 = vmul.f32 %v529, %v764
        %v789 = vmul.f32 %v530, %v764
        %v790 = vmul.f32 %v531, %v765
        %v791 = vmul.f32 %v532, %v765
        %v792 = vmul.f32 %v533, %v766
        %v793 = vmul.f32 %v534, %v766
        %v794 = vmul.f32 %v535, %v767
        %v795 = vmul.f32 %v536, %v767
        %v796 = vmul.f32 %v537, %v768
        %v797 = vmul.f32 %v538, %v768
        %v798 = vmul.f32 %v539, %v769
        %v799 = vmul.f32 %v540, %v769
        %v800 = vmul.f32 %v541, %v770
        %v801 = vmul.f32 %v542, %v770
        %v802 = vmul.f32 %v543, %v771
        %v803 = vmul.f32 %v544, %v771
        %v804 = vadd.f32 %v772, %v774
        %v805 = vadd.f32 %v804, %v776
        %v806 = vadd.f32 %v805, %v778
        %v807 = vadd.f32 %v806, %v780
        %v808 = vadd.f32 %v807, %v782
        %v809 = vadd.f32 %v808, %v784
        %v810 = vadd.f32 %v809, %v786
        %v811 = vadd.f32 %v810, %v788
        %v812 = vadd.f32 %v811, %v790
        %v813 = vadd.f32 %v812, %v792
        %v814 = vadd.f32 %v813, %v794
        %v815 = vadd.f32 %v814, %v796
        %v816 = vadd.f32 %v815, %v798
        %v817 = vadd.f32 %v816, %v800
        %v818 = vadd.f32 %v817, %v802
        %v819 = vrot.slane %v818, 4
        %v820 = vadd.f32 %v818, %v819
        %v821 = vrot.slane %v820, 2
        %v822 = vadd.f32 %v820, %v821
        %v823 = vrot.slane %v822, 1
        %v824 = vadd.f32 %v822, %v823
        %v825 = vadd.f32 %v773, %v775
        %v826 = vadd.f32 %v825, %v777
        %v827 = vadd.f32 %v826, %v779
        %v828 = vadd.f32 %v827, %v781
        %v829 = vadd.f32 %v828, %v783
        %v830 = vadd.f32 %v829, %v785
        %v831 = vadd.f32 %v830, %v787
        %v832 = vadd.f32 %v831, %v789
        %v833 = vadd.f32 %v832, %v791
        %v834 = vadd.f32 %v833, %v793
        %v835 = vadd.f32 %v834, %v795
        %v836 = vadd.f32 %v835, %v797
        %v837 = vadd.f32 %v836, %v799
        %v838 = vadd.f32 %v837, %v801
        %v839 = vadd.f32 %v838, %v803
        %v840 = vrot.slane %v839, 4
        %v841 = vadd.f32 %v839, %v840
        %v842 = vrot.slane %v841, 2
        %v843 = vadd.f32 %v841, %v842
        %v844 = vrot.slane %v843, 1
        %v845 = vadd.f32 %v843, %v844
        %v846 = vld [vmem:[%s4] sm:$0xff]
        %v847 = vld [vmem:[%s4 + $0x8] sm:$0xff]
        %v848 = vld [vmem:[%s4 + $0x10] sm:$0xff]
        %v849 = vld [vmem:[%s4 + $0x18] sm:$0xff]
        %v850 = vld [vmem:[%s4 + $0x20] sm:$0xff]
        %v851 = vld [vmem:[%s4 + $0x28] sm:$0xff]
        %v852 = vld [vmem:[%s4 + $0x30] sm:$0xff]
        %v853 = vld [vmem:[%s4 + $0x38] sm:$0xff]
        %v854 = vld [vmem:[%s4 + $0x40] sm:$0xff]
        %v855 = vld [vmem:[%s4 + $0x48] sm:$0xff]
        %v856 = vld [vmem:[%s4 + $0x50] sm:$0xff]
        %v857 = vld [vmem:[%s4 + $0x58] sm:$0xff]
        %v858 = vld [vmem:[%s4 + $0x60] sm:$0xff]
        %v859 = vld [vmem:[%s4 + $0x68] sm:$0xff]
        %v860 = vld [vmem:[%s4 + $0x70] sm:$0xff]
        %v861 = vld [vmem:[%s4 + $0x78] sm:$0xff]
        %v862 = vld [vmem:[%s4 + $0x80] sm:$0xff]
        %v863 = vld [vmem:[%s4 + $0x88] sm:$0xff]
        %v864 = vld [vmem:[%s4 + $0x90] sm:$0xff]
        %v865 = vld [vmem:[%s4 + $0x98] sm:$0xff]
        %v866 = vld [vmem:[%s4 + $0xa0] sm:$0xff]
        %v867 = vld [vmem:[%s4 + $0xa8] sm:$0xff]
        %v868 = vld [vmem:[%s4 + $0xb0] sm:$0xff]
        %v869 = vld [vmem:[%s4 + $0xb8] sm:$0xff]
        %v870 = vld [vmem:[%s4 + $0xc0] sm:$0xff]
        %v871 = vld [vmem:[%s4 + $0xc8] sm:$0xff]
        %v872 = vld [vmem:[%s4 + $0xd0] sm:$0xff]
        %v873 = vld [vmem:[%s4 + $0xd8] sm:$0xff]
        %v874 = vld [vmem:[%s4 + $0xe0] sm:$0xff]
        %v875 = vld [vmem:[%s4 + $0xe8] sm:$0xff]
        %v876 = vld [vmem:[%s4 + $0xf0] sm:$0xff]
        %v877 = vld [vmem:[%s4 + $0xf8] sm:$0xff]
        %878 = vmatprep.subr.mxu0 0.0
        %879 = vmatpush1.msra.mxu0 %v846
        %880 = vmatprep.subr.mxu0 0.0
        %881 = vmatpush1.msra.mxu0 %v847
        %882 = vmatprep.subr.mxu0 0.0
        %883 = vmatpush1.msra.mxu0 %v848
        %884 = vmatprep.subr.mxu0 0.0
        %885 = vmatpush1.msra.mxu0 %v849
        %886 = vmatprep.subr.mxu0 0.0
        %887 = vmatpush1.msra.mxu0 %v850
        %888 = vmatprep.subr.mxu0 0.0
        %889 = vmatpush1.msra.mxu0 %v851
        %890 = vmatprep.subr.mxu0 0.0
        %891 = vmatpush1.msra.mxu0 %v852
        %892 = vmatprep.subr.mxu0 0.0
        %893 = vmatpush1.msra.mxu0 %v853
        %894 = vmatprep.subr.mxu0 0.0
        %895 = vmatpush1.msra.mxu0 %v854
        %896 = vmatprep.subr.mxu0 0.0
        %897 = vmatpush1.msra.mxu0 %v855
        %898 = vmatprep.subr.mxu0 0.0
        %899 = vmatpush1.msra.mxu0 %v856
        %900 = vmatprep.subr.mxu0 0.0
        %901 = vmatpush1.msra.mxu0 %v857
        %902 = vmatprep.subr.mxu0 0.0
        %903 = vmatpush1.msra.mxu0 %v858
        %904 = vmatprep.subr.mxu0 0.0
        %905 = vmatpush1.msra.mxu0 %v859
        %906 = vmatprep.subr.mxu0 0.0
        %907 = vmatpush1.msra.mxu0 %v860
        %908 = vmatprep.subr.mxu0 0.0
        %909 = vmatpush1.msra.mxu0 %v861
        %910 = vmatprep.subr.mxu0 0.0
        %911 = vmatpush1.msra.mxu0 %v862
        %912 = vmatprep.subr.mxu0 0.0
        %913 = vmatpush1.msra.mxu0 %v863
        %914 = vmatprep.subr.mxu0 0.0
        %915 = vmatpush1.msra.mxu0 %v864
        %916 = vmatprep.subr.mxu0 0.0
        %917 = vmatpush1.msra.mxu0 %v865
        %918 = vmatprep.subr.mxu0 0.0
        %919 = vmatpush1.msra.mxu0 %v866
        %920 = vmatprep.subr.mxu0 0.0
        %921 = vmatpush1.msra.mxu0 %v867
        %922 = vmatprep.subr.mxu0 0.0
        %923 = vmatpush1.msra.mxu0 %v868
        %924 = vmatprep.subr.mxu0 0.0
        %925 = vmatpush1.msra.mxu0 %v869
        %926 = vmatprep.subr.mxu0 0.0
        %927 = vmatpush1.msra.mxu0 %v870
        %928 = vmatprep.subr.mxu0 0.0
        %929 = vmatpush1.msra.mxu0 %v871
        %930 = vmatprep.subr.mxu0 0.0
        %931 = vmatpush1.msra.mxu0 %v872
        %932 = vmatprep.subr.mxu0 0.0
        %933 = vmatpush1.msra.mxu0 %v873
        %934 = vmatprep.subr.mxu0 0.0
        %935 = vmatpush1.msra.mxu0 %v874
        %936 = vmatprep.subr.mxu0 0.0
        %937 = vmatpush1.msra.mxu0 %v875
        %938 = vmatprep.subr.mxu0 0.0
        %939 = vmatpush1.msra.mxu0 %v876
        %940 = vmatprep.subr.mxu0 0.0
        %941 = vmatpush1.msra.mxu0 %v877
        %942 = vmatprep.mubr.f32.mxu0 %v845
        %943 = vmatmul.mubr.f32.gmra.mrb[0].mxu0 %v824
        %v944 = vpop.f32.mrb[0].mxu0
        %v945 = vadd.f32 0.0, %v944
        %v946 = vpop.f32.mrb[0].mxu0
        %947 = vdwg.mxu0
        %v948 = vld [vmem:[%s265] sm:$0x1]
        %v949 = vadd.f32 %v948, %v945
        %vm950 = vcmask 57344
        %951 = vst.msk [vmem:[%s265] sm:$0x1] %vm950, %v949
        %s952 = sand.u32 %s162, 1
        %s953 = scalar_lea.sflag [#allocation3], %s952
        %s954 = sand.u32 %s162, 1
        %s955 = scalar_lea.vmem [#allocation2], %s954
        // Predicated region
        $region45: #{tpu_custom_call.1} parent=39 // pred_check
          %p956 = pneg %p172
        $region46: #{tpu_custom_call.1} parent=39 // pred_check_branch
          %958 = sbr.rel (%p956) target = $region48
        $region47: #{tpu_custom_call.1} parent=39 // pred_region
          %s960 = ssub.s32 16, 16
          %961 = vsyncadd %s953, %s960
          %s962 = smul.addr %s23, 16
          %s963 = scalar_lea.hbm %s5, %s962
          %s965 = sshll.u32 %s955, 4
          %s966 = int_to_ptr.vmem [resolvable:$true] %s965
          %968 = dma.vmem_to_hbm [thread:$0]  %s966, 16, %s963, %s953
        $region48: #{tpu_custom_call.1} parent=39 // pred_fallthru
          _
      $region40: #{tpu_custom_call.1} parent=5 // pred_fallthru
        _
      %p969 = scmp.le.s32.totalorder 2, %s14
      // Predicated region
      $region49: #{tpu_custom_call.1} parent=5 // pred_check
        %p970 = pneg %p969
      $region50: #{tpu_custom_call.1} parent=5 // pred_check_branch
        %972 = sbr.rel (%p970) target = $region52
      $region51: #{tpu_custom_call.1} parent=5 // pred_region
        %s973 = ssub.s32 %s14, 2
        // Predicated region
        $region53: #{tpu_custom_call.1} parent=51 // pred_check
          %p974 = pneg %p178
        $region54: #{tpu_custom_call.1} parent=51 // pred_check_branch
          %976 = sbr.rel (%p974) target = $region56
        $region55: #{tpu_custom_call.1} parent=51 // pred_region
          %s977 = sand.u32 %s163, 1
          %s978 = scalar_lea.sflag [#allocation3], %s977
          %s979 = sand.u32 %s163, 1
          %s980 = scalar_lea.vmem [#allocation2], %s979
          %981 = dma.done %s978, 16
        $region56: #{tpu_custom_call.1} parent=51 // pred_fallthru
          _
      $region52: #{tpu_custom_call.1} parent=5 // pred_fallthru
        _
    $region6: #{tpu_custom_call.1} parent=1 // loop_footer
      %s18 = sadd.s32 1, %s14
    $region7: #{tpu_custom_call.1} parent=1 // loop_footer_branch
      %13 = sbr.rel target = $region3
    $region8: #{tpu_custom_call.1} parent=1 // loop_exit
      _
    %982 = vsyncpa [#allocation3], 1
    %s983 = scalar_lea.sflag [#allocation3], 1
    %984 = vsyncpa %s983, 1

</llo_original>
